<compile_context>
chip_gen: v7x
topology: tpu7x:2x2x1
jax: 0.10.0
libtpu: 0.0.40
codegen_flags: <defaults>
</compile_context>

<pallas_src>
import functools

import jax
import jax.numpy as jnp
from jax.experimental import pallas as pl
from jax.experimental.pallas import tpu as pltpu

LANES = 128
ACC_SUBLANES = 8            # accumulator kept vreg-shaped: (8, 128) f32


def _round_up(x, m):
    return ((x + m - 1) // m) * m


@functools.lru_cache(maxsize=None)
def _tpu_kind():
    try:
        dev = jax.devices()[0]
        if dev.platform != "tpu":
            return ""
        return dev.device_kind.lower()
    except Exception:
        return ""


def _is_v7x():
    k = _tpu_kind()
    return ("v7" in k) or ("tpu7" in k) or ("7x" in k)


@functools.lru_cache(maxsize=None)
def _num_tensorcores():
    # v5e / v6e expose a single TensorCore per device; v7x has 2.  Only split
    # the row range when a real second core exists (avoids a duplicate clamped
    # block and the always-on mask path on single-core chips).
    return 2 if _is_v7x() else 1


def _sublane_multiple(dtype):
    return {4: 8, 2: 16, 1: 32}.get(jnp.dtype(dtype).itemsize, 8)


def _default_block_rows(itemsize):
    # Per-input block byte budget: 8 MiB on v7x (3.2 TB/s HBM amortizes the
    # ~0.35us fixed per-step overhead; 2 inputs x 2 buffers x 8 MiB = 32 MiB of
    # pipeline buffers fits the 64 MiB physical VMEM with headroom), 4 MiB on
    # v5e/v6e.  bf16 inputs automatically get 2x the rows for the same bytes.
    block_bytes = (8 << 20) if _is_v7x() else (4 << 20)
    return block_bytes // (LANES * itemsize)


def _loss_sum_kernel(p_ref, t_ref, out_ref, acc_ref, *,
                     block_rows, valid_rows, needs_mask, mode):
    """Accumulate a vreg-shaped (8, 128) partial sum of |p-t| or (p-t)^2."""
    c = pl.program_id(0)            # core / row-range split
    i = pl.program_id(1)            # reduction step (sequential per core)
    bpc = pl.num_programs(1)

    @pl.when(i == 0)
    def _():
        acc_ref[...] = jnp.zeros_like(acc_ref)

    d = p_ref[...].astype(jnp.float32) - t_ref[...].astype(jnp.float32)
    v = jnp.abs(d) if mode == "l1" else d * d

    def _accumulate(vals):
        # (block_rows, 128) -> (block_rows//8, 8, 128) is a tile-aligned,
        # layout-preserving reshape; the axis-0 sum is pure per-vreg VALU adds
        # (no XLU reduce on the steady-state path).
        acc_ref[...] += jnp.sum(vals.reshape(-1, ACC_SUBLANES, LANES), axis=0)

    if needs_mask:
        # Intended (unclamped) starting row of this block.  Only blocks that
        # overrun the valid row range (partial last block, or a clamped
        # duplicate block whose row0 >= valid_rows) pay the iota+select.
        row0 = (c * bpc + i) * block_rows

        @pl.when(row0 + block_rows <= valid_rows)
        def _():
            _accumulate(v)

        @pl.when(row0 + block_rows > valid_rows)
        def _():
            local_row = jax.lax.broadcasted_iota(jnp.int32, v.shape, 0)
            _accumulate(jnp.where(local_row < valid_rows - row0, v, 0.0))
    else:
        _accumulate(v)

    @pl.when(i == bpc - 1)
    def _():
        out_ref[...] = acc_ref[...]


def _loss_sum(pred2d, target2d, *, mode, block_rows=None):
    """sum |p-t| (mode='l1') or sum (p-t)^2 (mode='mse') over a (rows,128) slab."""
    assert mode in ("l1", "mse")
    assert pred2d.shape == target2d.shape
    rows, cols = pred2d.shape
    assert cols == LANES

    p_item = jnp.dtype(pred2d.dtype).itemsize
    t_item = jnp.dtype(target2d.dtype).itemsize
    sub_mult = max(_sublane_multiple(pred2d.dtype),
                   _sublane_multiple(target2d.dtype), ACC_SUBLANES)

    if block_rows is None:
        block_rows = _default_block_rows(max(p_item, t_item))
    block_rows = max(block_rows, sub_mult)
    block_rows = min(block_rows, _round_up(rows, sub_mult))
    block_rows = _round_up(block_rows, sub_mult)

    total_blocks = pl.cdiv(rows, block_rows)
    num_cores = _num_tensorcores()
    if total_blocks < num_cores:
        num_cores = 1
    bpc = pl.cdiv(total_blocks, num_cores)          # blocks per core
    last_block = total_blocks - 1
    # Mask needed when the last block is partial or a core's range runs past
    # the last block (that block index is clamped so the DMA stays in bounds;
    # its contribution is zeroed inside the kernel).
    needs_mask = (num_cores * bpc * block_rows) != rows

    def in_map(c, i):
        blk = c * bpc + i
        if needs_mask:
            blk = jnp.minimum(blk, last_block)      # never DMA a fully-OOB block
        return (blk, 0)

    kernel = functools.partial(
        _loss_sum_kernel,
        block_rows=block_rows, valid_rows=rows,
        needs_mask=needs_mask, mode=mode)

    # Double-buffered inputs + small accumulator/output, with headroom.
    in_bytes = 2 * block_rows * LANES * (p_item + t_item)
    vmem_limit = max(in_bytes + (8 << 20), 16 << 20)

    core_sem = (getattr(pltpu, "CORE_PARALLEL", "parallel") if num_cores > 1
                else getattr(pltpu, "ARBITRARY", "arbitrary"))
    arb_sem = getattr(pltpu, "ARBITRARY", "arbitrary")

    partial = pl.pallas_call(
        kernel,
        out_shape=jax.ShapeDtypeStruct((num_cores * ACC_SUBLANES, LANES),
                                       jnp.float32),
        grid_spec=pltpu.PrefetchScalarGridSpec(
            num_scalar_prefetch=0,
            grid=(num_cores, bpc),
            in_specs=[
                pl.BlockSpec((block_rows, LANES), in_map),
                pl.BlockSpec((block_rows, LANES), in_map),
            ],
            out_specs=pl.BlockSpec((ACC_SUBLANES, LANES), lambda c, i: (c, 0)),
            scratch_shapes=[
                pltpu.VMEM((ACC_SUBLANES, LANES), jnp.float32),
            ],
        ),
        compiler_params=pltpu.CompilerParams(
            dimension_semantics=(core_sem, arb_sem),
            vmem_limit_bytes=int(vmem_limit),
        ),
        cost_estimate=pl.CostEstimate(
            flops=3 * rows * LANES,
            transcendentals=0,
            bytes_accessed=rows * LANES * (p_item + t_item)
            + num_cores * ACC_SUBLANES * LANES * 4,
        ),
    )(pred2d, target2d)

    # Tiny final cross-lane / cross-sublane / cross-core reduce.
    return jnp.sum(partial)


class LossConfig:
    """Mirrors the relevant fields of `args` in the PyTorch module."""

    def __init__(self, epochs=10, perceptual_loss=False, cuda=False):
        self.epochs = epochs
        self.perceptual_loss = perceptual_loss
        self.cuda = cuda


class Loss:
    """JAX/Pallas port of the PyTorch `Loss` module (forward pass only)."""

    def __init__(self, args: LossConfig):
        self.args = args
        self.perceptual_loss = bool(args.perceptual_loss)
        # TODO(synk): perceptual branch requires a pretrained ResNet-34 forward
        # pass; not reproduced here (args.perceptual_loss is expected False).

    def __call__(self, pred, target, epoch_id):
        # NOTE: epoch_id must be a Python int (resolved at trace time),
        # matching the PyTorch control flow -> only the needed sum is computed.
        assert pred.shape == target.shape
        mode = "l1" if epoch_id < self.args.epochs // 2 else "mse"

        flat_p = pred.reshape(-1)          # free reshape, no copy
        flat_t = target.reshape(-1)
        n = flat_p.shape[0]
        rows = n // LANES
        main_elems = rows * LANES

        total = jnp.float32(0.0)
        if rows > 0:
            if main_elems == n:
                p2d = flat_p.reshape(rows, LANES)
                t2d = flat_t.reshape(rows, LANES)
            else:
                # Rare unaligned path: kernel handles the lane-aligned prefix,
                # the (<128 element) tail is reduced outside the kernel so no
                # padded HBM copy of the inputs is materialized.
                p2d = flat_p[:main_elems].reshape(rows, LANES)
                t2d = flat_t[:main_elems].reshape(rows, LANES)
            total = total + _loss_sum(p2d, t2d, mode=mode)
        if main_elems < n:
            dt = (flat_p[main_elems:].astype(jnp.float32)
                  - flat_t[main_elems:].astype(jnp.float32))
            tail = jnp.sum(jnp.abs(dt)) if mode == "l1" else jnp.sum(dt * dt)
            total = total + tail

        pixel_loss = total / jnp.float32(n)   # L1Loss / MSELoss -> mean reduction
        perceptual_loss = 0
        return pixel_loss, perceptual_loss


if __name__ == "__main__":
    key = jax.random.PRNGKey(0)
    k1, k2 = jax.random.split(key)
    B, C, H, W = 2, 4, 16, 16  # NCHW, same convention as PyTorch
    pred = jax.random.normal(k1, (B, C, H, W), dtype=jnp.float32)
    target = jax.random.normal(k2, (B, C, H, W), dtype=jnp.float32)

    args = LossConfig(epochs=10, perceptual_loss=False, cuda=False)
    loss_fn = Loss(args)

    # Early epoch -> L1 loss; late epoch -> MSE loss.
    pixel_l1, _ = loss_fn(pred, target, epoch_id=1)
    pixel_mse, _ = loss_fn(pred, target, epoch_id=9)
    jax.block_until_ready((pixel_l1, pixel_mse))

    ref_l1 = jnp.mean(jnp.abs(pred - target))
    ref_mse = jnp.mean((pred - target) ** 2)
    assert jnp.allclose(pixel_l1, ref_l1, rtol=1e-5, atol=1e-6)
    assert jnp.allclose(pixel_mse, ref_mse, rtol=1e-5, atol=1e-6)

    # Unaligned numel (1300): (10,128) prefix through the kernel (tail-mask
    # branch exercised on v7x's core split) + 20-element tail outside.
    k3, k4 = jax.random.split(k2)
    a = jax.random.normal(k3, (1300,), dtype=jnp.float32)
    b = jax.random.normal(k4, (1300,), dtype=jnp.float32)
    l1_u, _ = loss_fn(a, b, epoch_id=0)
    mse_u, _ = loss_fn(a, b, epoch_id=9)
    jax.block_until_ready((l1_u, mse_u))
    assert jnp.allclose(l1_u, jnp.mean(jnp.abs(a - b)), rtol=1e-5, atol=1e-6)
    assert jnp.allclose(mse_u, jnp.mean((a - b) ** 2), rtol=1e-5, atol=1e-6)

    # Multi-block path with a forced small block size through the raw helper.
    k5, k6 = jax.random.split(k4)
    x2d = jax.random.normal(k5, (40, LANES), dtype=jnp.float32)
    y2d = jax.random.normal(k6, (40, LANES), dtype=jnp.float32)
    s_l1 = _loss_sum(x2d, y2d, mode="l1", block_rows=8)
    s_sq = _loss_sum(x2d, y2d, mode="mse", block_rows=8)
    jax.block_until_ready((s_l1, s_sq))
    assert jnp.allclose(s_l1, jnp.sum(jnp.abs(x2d - y2d)), rtol=1e-5, atol=1e-5)
    assert jnp.allclose(s_sq, jnp.sum((x2d - y2d) ** 2), rtol=1e-5, atol=1e-5)

    # bf16 inputs: bf16 DMA, f32 accumulation inside the kernel.
    pb = jax.random.normal(k5, (2, 3, 32, 40), dtype=jnp.float32).astype(jnp.bfloat16)
    tb = jax.random.normal(k6, (2, 3, 32, 40), dtype=jnp.float32).astype(jnp.bfloat16)
    l1_b, _ = loss_fn(pb, tb, epoch_id=0)
    jax.block_until_ready(l1_b)
    ref_b = jnp.mean(jnp.abs(pb.astype(jnp.float32) - tb.astype(jnp.float32)))
    assert jnp.allclose(l1_b, ref_b, rtol=1e-4, atol=1e-5)

    print("KERNEL_OK")
</pallas_src>

<mosaic_0001>
module attributes {stable_mosaic.version = 11 : i64} {
  func.func @_loss_sum_kernel(%arg0: i32, %arg1: i32, %arg2: memref<16x128xf32, #tpu.memory_space<vmem>>, %arg3: memref<16x128xf32, #tpu.memory_space<vmem>>, %arg4: memref<8x128xf32, #tpu.memory_space<vmem>>, %arg5: memref<8x128xf32, #tpu.memory_space<vmem>>) attributes {dimension_semantics = [#tpu.dimension_semantics<arbitrary>, #tpu.dimension_semantics<arbitrary>], iteration_bounds = array<i64: 1, 1>, scalar_prefetch = 0 : i64, scratch_operands = 1 : i64, tpu.core_type = #tpu.core_type<tc>, window_params = [{transform_indices = @transform_0, window_bounds = array<i64: 16, 128>}, {transform_indices = @transform_1, window_bounds = array<i64: 16, 128>}, {transform_indices = @transform_2, window_bounds = array<i64: 8, 128>}]} {
    %c0_i32 = arith.constant 0 : i32
    %0 = arith.cmpi eq, %arg1, %c0_i32 : i32
    %1 = arith.extui %0 : i1 to i32
    %c0_i32_0 = arith.constant 0 : i32
    %2 = arith.cmpi ne, %1, %c0_i32_0 : i32
    scf.if %2 {
      %cst_10 = arith.constant 0.000000e+00 : f32
      %15 = vector.broadcast %cst_10 : f32 to vector<8x128xf32>
      %c0_11 = arith.constant 0 : index
      %c0_12 = arith.constant 0 : index
      %16 = vector.load %arg5[%c0_11, %c0_12] : memref<8x128xf32, #tpu.memory_space<vmem>>, vector<8x128xf32>
      tpu.vector_store %arg5[%c0_11, %c0_12], %15 {strides = array<i32>} : memref<8x128xf32, #tpu.memory_space<vmem>>, vector<8x128xf32>,
    } else {
    }
    %c0 = arith.constant 0 : index
    %c0_1 = arith.constant 0 : index
    %3 = vector.load %arg2[%c0, %c0_1] : memref<16x128xf32, #tpu.memory_space<vmem>>, vector<16x128xf32>
    %c0_2 = arith.constant 0 : index
    %c0_3 = arith.constant 0 : index
    %4 = vector.load %arg3[%c0_2, %c0_3] : memref<16x128xf32, #tpu.memory_space<vmem>>, vector<16x128xf32>
    %5 = arith.subf %3, %4 : vector<16x128xf32>
    %6 = math.absf %5 : vector<16x128xf32>
    %c0_4 = arith.constant 0 : index
    %c0_5 = arith.constant 0 : index
    %7 = vector.load %arg5[%c0_4, %c0_5] : memref<8x128xf32, #tpu.memory_space<vmem>>, vector<8x128xf32>
    %8 = vector.shape_cast %6 : vector<16x128xf32> to vector<2x8x128xf32>
    %cst = arith.constant dense<0.000000e+00> : vector<8x128xf32>
    %9 = vector.multi_reduction <add>, %8, %cst [0] : vector<2x8x128xf32> to vector<8x128xf32>
    %10 = arith.addf %7, %9 : vector<8x128xf32>
    %c0_6 = arith.constant 0 : index
    %c0_7 = arith.constant 0 : index
    %11 = vector.load %arg5[%c0_6, %c0_7] : memref<8x128xf32, #tpu.memory_space<vmem>>, vector<8x128xf32>
    tpu.vector_store %arg5[%c0_6, %c0_7], %10 {strides = array<i32>} : memref<8x128xf32, #tpu.memory_space<vmem>>, vector<8x128xf32>,
    %c0_i32_8 = arith.constant 0 : i32
    %12 = arith.cmpi eq, %arg1, %c0_i32_8 : i32
    %13 = arith.extui %12 : i1 to i32
    %c0_i32_9 = arith.constant 0 : i32
    %14 = arith.cmpi ne, %13, %c0_i32_9 : i32
    scf.if %14 {
      %c0_10 = arith.constant 0 : index
      %c0_11 = arith.constant 0 : index
      %15 = vector.load %arg5[%c0_10, %c0_11] : memref<8x128xf32, #tpu.memory_space<vmem>>, vector<8x128xf32>
      %c0_12 = arith.constant 0 : index
      %c0_13 = arith.constant 0 : index
      %16 = vector.load %arg4[%c0_12, %c0_13] : memref<8x128xf32, #tpu.memory_space<vmem>>, vector<8x128xf32>
      tpu.vector_store %arg4[%c0_12, %c0_13], %15 {strides = array<i32>} : memref<8x128xf32, #tpu.memory_space<vmem>>, vector<8x128xf32>,
    } else {
    }
    return
  }
  func.func @transform_0(%arg0: i32, %arg1: i32) -> (i32, i32) {
    %c1_i32 = arith.constant 1 : i32
    %0 = arith.muli %arg0, %c1_i32 : i32
    %1 = arith.addi %0, %arg1 : i32
    %c0_i32 = arith.constant 0 : i32
    %c0_i32_0 = arith.constant 0 : i32
    return %1, %c0_i32 : i32, i32
  }
  func.func @transform_1(%arg0: i32, %arg1: i32) -> (i32, i32) {
    %c1_i32 = arith.constant 1 : i32
    %0 = arith.muli %arg0, %c1_i32 : i32
    %1 = arith.addi %0, %arg1 : i32
    %c0_i32 = arith.constant 0 : i32
    %c0_i32_0 = arith.constant 0 : i32
    return %1, %c0_i32 : i32, i32
  }
  func.func @transform_2(%arg0: i32, %arg1: i32) -> (i32, i32) {
    %c0_i32 = arith.constant 0 : i32
    %c0_i32_0 = arith.constant 0 : i32
    return %arg0, %c0_i32 : i32, i32
  }
}

</mosaic_0001>

<llo_original>
// kernel: tpu_custom_call.1
$region0: #{tpu_custom_call.1}
  #allocation0 [shape = 'u32[]', space=smem, size = 0x4, offset = 0x4, fixed_abs, tag = 'smem constant byte address 0x4 - core index']
  #allocation1 [shape = 'u32[144,128]{1,0:T(1,128)}', space=vmem, size = 0x12000, scoped, tag = 'internal scratch']
  #allocation2 [shape = 'f32[8,128]{1,0:T(8,128)}', space=vmem, size = 0x1000, scoped, tag = 'scratch operand']
  %s0 = inlined_call_operand.hbm [shape: f32[16,128], index: 0, kind: input, shape index: {}]
  %s1 = inlined_call_operand.hbm [shape: f32[16,128], index: 1, kind: input, shape index: {}]
  %s2 = inlined_call_operand.hbm [shape: f32[8,128], index: 2, kind: output, shape index: {}]
  %s3 = sld [smem:[#allocation0]]
  $region34: #{tpu_custom_call.1} parent=0
    _
  %s5 = ssub.s32 1, %s3
  %s6 = scalar_select 0, %s5, %s3
  $region1: #{tpu_custom_call.1} parent=0
    #allocation3 [shape = 'u8[8192]{0}', space=vmem, size = 0x2000, scoped, tag = 'input window, operand 0, single buffered']
    #allocation4 [shape = 's32[1]{0}', space=sflag, size = 0x4, scoped, tag = 'scoped memory for tpu_custom_call.1']
    #allocation5 [shape = 's32[1]{0}', space=sflag, size = 0x4, scoped, tag = 'scoped memory for tpu_custom_call.1']
    #allocation6 [shape = 'u8[8192]{0}', space=vmem, size = 0x2000, scoped, tag = 'input window, operand 1, single buffered']
    #allocation7 [shape = 's32[1]{0}', space=sflag, size = 0x4, scoped, tag = 'scoped memory for tpu_custom_call.1']
    #allocation8 [shape = 'u8[4096]{0}', space=vmem, size = 0x1000, scoped, tag = 'output window, operand 0, single buffered']
    %7 = vsyncpa [#allocation4], 0
    %8 = vsyncpa [#allocation7], 0
    %9 = vsyncpa [#allocation5], 0
    // Predicated region
    $region2: #{tpu_custom_call.1} parent=1 // pred_check
      _
    $region3: #{tpu_custom_call.1} parent=1 // pred_check_branch
      %11 = sbr.rel (0) target = $region5
    $region4: #{tpu_custom_call.1} parent=1 // pred_region
      %s12 = sadd.s32 0, 0
      %s13 = smul.u32 2, %s12
      %s15 = ssub.s32 256, 256
      %16 = vsyncadd [#allocation4], %s15
      %s17 = smul.addr %s13, 128
      %s18 = scalar_lea.hbm %s0, %s17
      %s19 = sshll.u32 [#allocation3], 4
      %s20 = int_to_ptr.vmem [resolvable:$true] %s19
      %25 = dma.hbm_to_vmem [thread:$0]  %s18, 256, %s20, [#allocation4], 128, 128, 8
    $region5: #{tpu_custom_call.1} parent=1 // pred_fallthru
      _
    // Predicated region
    $region6: #{tpu_custom_call.1} parent=1 // pred_check
      _
    $region7: #{tpu_custom_call.1} parent=1 // pred_check_branch
      %27 = sbr.rel (0) target = $region9
    $region8: #{tpu_custom_call.1} parent=1 // pred_region
      %s28 = sadd.s32 0, 0
      %s29 = smul.u32 2, %s28
      %s31 = ssub.s32 256, 256
      %32 = vsyncadd [#allocation7], %s31
      %s33 = smul.addr %s29, 128
      %s34 = scalar_lea.hbm %s1, %s33
      %s35 = sshll.u32 [#allocation6], 4
      %s36 = int_to_ptr.vmem [resolvable:$true] %s35
      %41 = dma.hbm_to_vmem [thread:$0]  %s34, 256, %s36, [#allocation7], 128, 128, 8
    $region9: #{tpu_custom_call.1} parent=1 // pred_fallthru
      _
    // Predicated region
    $region10: #{tpu_custom_call.1} parent=1 // pred_check
      _
    $region11: #{tpu_custom_call.1} parent=1 // pred_check_branch
      %43 = sbr.rel (0) target = $region13
    $region12: #{tpu_custom_call.1} parent=1 // pred_region
      %44 = dma.done [#allocation4], 256
    $region13: #{tpu_custom_call.1} parent=1 // pred_fallthru
      _
    // Predicated region
    $region14: #{tpu_custom_call.1} parent=1 // pred_check
      _
    $region15: #{tpu_custom_call.1} parent=1 // pred_check_branch
      %46 = sbr.rel (0) target = $region17
    $region16: #{tpu_custom_call.1} parent=1 // pred_region
      %47 = dma.done [#allocation7], 256
    $region17: #{tpu_custom_call.1} parent=1 // pred_fallthru
      _
    %s48 = sadd.s32 0, 0
    %s49 = smul.u32 2, %s48
    %s50 = sadd.s32 0, 0
    %s51 = smul.u32 2, %s50
    %p52 = scmp.eq.s32.totalorder 0, 0
    // Predicated region
    $region18: #{tpu_custom_call.1} parent=1 // pred_check
      %p53 = pneg %p52
    $region19: #{tpu_custom_call.1} parent=1 // pred_check_branch
      %55 = sbr.rel (%p53) target = $region21
    $region20: #{tpu_custom_call.1} parent=1 // pred_region
      %56 = vst [vmem:[#allocation2] sm:$0xff] 0.0
    $region21: #{tpu_custom_call.1} parent=1 // pred_fallthru
      _
    %v57 = vld [vmem:[#allocation3] sm:$0xff]
    %v58 = vld [vmem:[#allocation3 + $0x8] sm:$0xff]
    %v59 = vld [vmem:[#allocation6] sm:$0xff]
    %v60 = vld [vmem:[#allocation6 + $0x8] sm:$0xff]
    %v61 = vsub.f32 %v57, %v59
    %v62 = vsub.f32 %v58, %v60
    %v63 = vand.u32 2147483647, %v61
    %v64 = vand.u32 2147483647, %v62
    %v65 = vld [vmem:[#allocation2] sm:$0xff]
    %v66 = vadd.f32 %v63, %v64
    %v67 = vadd.f32 %v65, %v66
    %68 = vst [vmem:[#allocation2] sm:$0xff] %v67
    // Predicated region
    $region22: #{tpu_custom_call.1} parent=1 // pred_check
      %p69 = pneg %p52
    $region23: #{tpu_custom_call.1} parent=1 // pred_check_branch
      %71 = sbr.rel (%p69) target = $region25
    $region24: #{tpu_custom_call.1} parent=1 // pred_region
      %v72 = vld [vmem:[#allocation2] sm:$0xff]
      %73 = vst [vmem:[#allocation8] sm:$0xff] %v72
    $region25: #{tpu_custom_call.1} parent=1 // pred_fallthru
      _
    // Predicated region
    $region26: #{tpu_custom_call.1} parent=1 // pred_check
      _
    $region27: #{tpu_custom_call.1} parent=1 // pred_check_branch
      %75 = sbr.rel (0) target = $region29
    $region28: #{tpu_custom_call.1} parent=1 // pred_region
      %s77 = ssub.s32 128, 128
      %78 = vsyncadd [#allocation5], %s77
      %s80 = sshll.u32 [#allocation8], 4
      %s81 = int_to_ptr.vmem [resolvable:$true] %s80
      %83 = dma.vmem_to_hbm [thread:$0]  %s81, 128, %s2, [#allocation5]
    $region29: #{tpu_custom_call.1} parent=1 // pred_fallthru
      _
    // Predicated region
    $region30: #{tpu_custom_call.1} parent=1 // pred_check
      _
    $region31: #{tpu_custom_call.1} parent=1 // pred_check_branch
      %85 = sbr.rel (0) target = $region33
    $region32: #{tpu_custom_call.1} parent=1 // pred_region
      %86 = dma.done [#allocation5], 128
    $region33: #{tpu_custom_call.1} parent=1 // pred_fallthru
      _
    %87 = vsyncpa [#allocation4], 1
    %88 = vsyncpa [#allocation7], 1
    %89 = vsyncpa [#allocation5], 1

</llo_original>
